<compile_context>
chip_gen: v5e
topology: v5e:2x2
jax: 0.10.0
libtpu: 0.0.40
codegen_flags: <defaults>
</compile_context>

<pallas_src>
import functools

import jax
import jax.numpy as jnp
from jax.experimental import pallas as pl
from jax.experimental.pallas import tpu as pltpu


def _ffn_kernel(x_ref, w1_ref, b1_ref, w2_ref, b2_ref, g_ref, be_ref,
                o_ref, acc_ref, *, eps, d_real):
    # x_ref:  (tm, Dp)        row tile (resident across the k axis)
    # w1_ref: (Dp, tk)        fc1 weight chunk, pre-transposed (in_features, out_features)
    # b1_ref: (1, tk)         fc1 bias chunk (f32)
    # w2_ref: (tk, Dp)        fc2 weight chunk, pre-transposed (in_features, out_features)
    # b2_ref/g_ref/be_ref: (1, Dp)   (f32)
    # o_ref:  (tm, Dp)        output tile (written on last k step)
    # acc_ref:(tm, Dp) f32    accumulator over hidden-dim chunks
    k = pl.program_id(1)

    @pl.when(k == 0)
    def _():
        acc_ref[...] = jnp.zeros_like(acc_ref)

    # fc1 chunk: standard (tm, Dp) x (Dp, tk) contraction -> f32.
    h = jnp.dot(x_ref[...], w1_ref[...], preferred_element_type=jnp.float32)
    h = jnp.maximum(h + b1_ref[...].astype(jnp.float32), 0.0)
    # (dropout: identity in eval mode)

    # fc2 partial: (tm, tk) x (tk, Dp), accumulate in f32.
    acc_ref[...] += jnp.dot(h.astype(w2_ref.dtype), w2_ref[...],
                            preferred_element_type=jnp.float32)

    @pl.when(k == pl.num_programs(1) - 1)
    def _():
        # (dropout: identity in eval mode)
        # Fold bias2 + residual back into the accumulator (keeps the epilogue live-set small).
        acc_ref[...] += b2_ref[...].astype(jnp.float32) + x_ref[...].astype(jnp.float32)
        z = acc_ref[...]                                   # padded lanes are exactly zero
        dp = z.shape[-1]
        inv_d = 1.0 / float(d_real)
        mean = jnp.sum(z, axis=-1, keepdims=True) * inv_d  # sum over Dp == sum over D
        if dp == d_real:
            zc = z - mean
        else:
            col = jax.lax.broadcasted_iota(jnp.int32, z.shape, 1)
            zc = jnp.where(col < d_real, z - mean, 0.0)
        var = jnp.sum(zc * zc, axis=-1, keepdims=True) * inv_d   # biased (PyTorch LN)
        out = (zc * jax.lax.rsqrt(var + eps) * g_ref[...].astype(jnp.float32)
               + be_ref[...].astype(jnp.float32))
        o_ref[...] = out.astype(o_ref.dtype)


def _round_up(x, m):
    return (x + m - 1) // m * m


def _pad2(a, rows, cols):
    pr, pc = rows - a.shape[0], cols - a.shape[1]
    if pr == 0 and pc == 0:
        return a
    return jnp.pad(a, ((0, pr), (0, pc)))


def feedforward_layer(x, w1, b1, w2, b2, gamma, beta, *, eps=1e-5,
                      tm=None, tk=512, compute_dtype=jnp.bfloat16):
    """x: (B, S, D). w1: (H, D) [fc1.weight], b1: (H,),
       w2: (D, H) [fc2.weight], b2: (D,), gamma/beta: (D,)."""
    B, S, D = x.shape
    H = w1.shape[0]
    M = B * S

    Dp = _round_up(D, 128)
    Hp = _round_up(H, 128)

    # ---- generation-aware VMEM capacity ------------------------------------
    try:
        vmem_cap = int(pltpu.get_tpu_info().vmem_capacity_bytes)
    except Exception:
        vmem_cap = 64 * 1024 * 1024          # conservative (v7x physical VMEM)

    cdt = jnp.dtype(compute_dtype) if compute_dtype is not None else jnp.dtype(x.dtype)
    out_dt = jnp.dtype(x.dtype)
    w_itm = cdt.itemsize
    x_itm = cdt.itemsize
    out_itm = out_dt.itemsize

    # ---- hidden-dim tiling: resident weights when they fit -----------------
    weight_bytes_full = 2 * 2 * Dp * Hp * w_itm        # two weights, double-buffered
    weights_resident = weight_bytes_full <= int(0.4 * vmem_cap)
    if weights_resident:
        tk_eff = Hp
    else:
        # largest 128-multiple divisor of Hp that is <= tk (no dead hidden padding)
        tk_eff = 128
        cand = 128
        while cand <= min(tk, Hp):
            if Hp % cand == 0:
                tk_eff = cand
            cand += 128

    # ---- row tiling ---------------------------------------------------------
    if tm is None:
        tm = 512 if vmem_cap >= (100 << 20) else 256
    tm_eff = min(tm, _round_up(M, 8))
    # guarantee >= 2 row tiles when possible (megacore / 2 TCs on v7x)
    if M > 8 and _round_up(M, tm_eff) // tm_eff < 2:
        tm_eff = _round_up(-(-M // 2), 8)

    def _vmem_estimate(tm_e, tk_e):
        return (2 * tm_e * Dp * x_itm            # x tile (double-buffered)
                + 2 * tm_e * Dp * out_itm        # out tile
                + 2 * Dp * tk_e * w_itm          # W1^T chunk
                + 2 * tk_e * Dp * w_itm          # W2^T chunk
                + 2 * tk_e * 4 + 6 * Dp * 4      # biases / LN params (f32)
                + tm_e * Dp * 4                  # f32 accumulator scratch
                + tm_e * tk_e * 4)               # h intermediate

    budget = int(0.85 * vmem_cap)
    while _vmem_estimate(tm_eff, tk_eff) > budget:
        if tm_eff > 8:
            tm_eff = max(8, ((tm_eff // 2) + 7) // 8 * 8)
        elif (tk_eff > 128 and (tk_eff // 2) % 128 == 0 and Hp % (tk_eff // 2) == 0):
            tk_eff //= 2
            weights_resident = False
        else:
            break

    Mp = _round_up(M, tm_eff)
    grid = (Mp // tm_eff, Hp // tk_eff)

    # ---- operand preparation (pad + pre-transpose + cast once) -------------
    x2 = _pad2(x.reshape(M, D), Mp, Dp).astype(cdt)
    w1t = _pad2(w1.T, Dp, Hp).astype(cdt)                 # (Dp, Hp)  in-major
    w2t = _pad2(w2.T, Hp, Dp).astype(cdt)                 # (Hp, Dp)  in-major
    b1p = _pad2(b1.reshape(1, H).astype(jnp.float32), 1, Hp)
    b2p = _pad2(b2.reshape(1, D).astype(jnp.float32), 1, Dp)
    gp = _pad2(gamma.reshape(1, D).astype(jnp.float32), 1, Dp)
    bep = _pad2(beta.reshape(1, D).astype(jnp.float32), 1, Dp)

    kernel = functools.partial(_ffn_kernel, eps=eps, d_real=D)

    vmem_limit = int(min(_vmem_estimate(tm_eff, tk_eff) + (16 << 20),
                         int(0.9 * vmem_cap)))

    num_row_tiles = Mp // tm_eff
    weight_stream = 1 if weights_resident else num_row_tiles
    cost = pl.CostEstimate(
        flops=4 * M * D * H + 8 * M * D,
        transcendentals=M,
        bytes_accessed=(Mp * Dp * x_itm                       # x read
                        + Mp * Dp * out_itm                   # output writeback
                        + weight_stream * 2 * Dp * Hp * w_itm  # weight (re-)stream
                        + 2 * Hp * 4 + 3 * Dp * 4),
    )

    out2 = pl.pallas_call(
        kernel,
        out_shape=jax.ShapeDtypeStruct((Mp, Dp), out_dt),
        grid_spec=pltpu.PrefetchScalarGridSpec(
            num_scalar_prefetch=0,
            grid=grid,
            in_specs=[
                pl.BlockSpec((tm_eff, Dp), lambda i, k: (i, 0)),   # x row tile
                pl.BlockSpec((Dp, tk_eff), lambda i, k: (0, k)),   # W1^T chunk
                pl.BlockSpec((1, tk_eff), lambda i, k: (0, k)),    # b1 chunk
                pl.BlockSpec((tk_eff, Dp), lambda i, k: (k, 0)),   # W2^T chunk
                pl.BlockSpec((1, Dp), lambda i, k: (0, 0)),        # b2
                pl.BlockSpec((1, Dp), lambda i, k: (0, 0)),        # ln gamma
                pl.BlockSpec((1, Dp), lambda i, k: (0, 0)),        # ln beta
            ],
            out_specs=pl.BlockSpec((tm_eff, Dp), lambda i, k: (i, 0)),
            scratch_shapes=[pltpu.VMEM((tm_eff, Dp), jnp.float32)],
        ),
        compiler_params=pltpu.CompilerParams(
            dimension_semantics=("parallel", "arbitrary"),
            vmem_limit_bytes=vmem_limit),
        cost_estimate=cost,
    )(x2, w1t, b1p, w2t, b2p, gp, bep)

    return out2[:M, :D].reshape(B, S, D)


def _reference(x, w1, b1, w2, b2, gamma, beta, eps=1e-5):
    res = x
    h = jnp.maximum(jnp.einsum("bsd,hd->bsh", x, w1) + b1, 0.0)
    y = jnp.einsum("bsh,dh->bsd", h, w2) + b2
    z = y + res
    mean = jnp.mean(z, axis=-1, keepdims=True)
    var = jnp.mean((z - mean) ** 2, axis=-1, keepdims=True)
    return (z - mean) * jax.lax.rsqrt(var + eps) * gamma + beta


if __name__ == "__main__":
    # Small shapes consistent with the module: x is (batch, seq, input_dim)
    B, S, D, H = 2, 8, 32, 64

    key = jax.random.PRNGKey(0)
    kx, kw1, kb1, kw2, kb2 = jax.random.split(key, 5)

    x = jax.random.normal(kx, (B, S, D), dtype=jnp.float32)

    # Deterministic parameter init (PyTorch Linear-style uniform bounds).
    bound1 = 1.0 / jnp.sqrt(D)
    w1 = jax.random.uniform(kw1, (H, D), jnp.float32, -bound1, bound1)  # fc1.weight
    b1 = jax.random.uniform(kb1, (H,), jnp.float32, -bound1, bound1)    # fc1.bias
    bound2 = 1.0 / jnp.sqrt(H)
    w2 = jax.random.uniform(kw2, (D, H), jnp.float32, -bound2, bound2)  # fc2.weight
    b2 = jax.random.uniform(kb2, (D,), jnp.float32, -bound2, bound2)    # fc2.bias
    gamma = jnp.ones((D,), jnp.float32)                                  # layer_norm.weight
    beta = jnp.zeros((D,), jnp.float32)                                  # layer_norm.bias

    out = feedforward_layer(x, w1, b1, w2, b2, gamma, beta)
    out = jax.block_until_ready(out)

    ref = _reference(x, w1, b1, w2, b2, gamma, beta)
    assert out.shape == (B, S, D)
    # bf16 MXU inputs (f32 accumulation) => compare against the f32 reference with a
    # tolerance appropriate for bf16-rounded operands.
    assert jnp.allclose(out, ref, atol=3e-2, rtol=3e-2), "mismatch vs reference"

    print("KERNEL_OK")
</pallas_src>

<mosaic_0001>
module attributes {stable_mosaic.version = 11 : i64} {
  func.func @_ffn_kernel(%arg0: i32, %arg1: i32, %arg2: memref<8x128xbf16, #tpu.memory_space<vmem>>, %arg3: memref<128x128xbf16, #tpu.memory_space<vmem>>, %arg4: memref<1x128xf32, #tpu.memory_space<vmem>>, %arg5: memref<128x128xbf16, #tpu.memory_space<vmem>>, %arg6: memref<1x128xf32, #tpu.memory_space<vmem>>, %arg7: memref<1x128xf32, #tpu.memory_space<vmem>>, %arg8: memref<1x128xf32, #tpu.memory_space<vmem>>, %arg9: memref<8x128xf32, #tpu.memory_space<vmem>>, %arg10: memref<8x128xf32, #tpu.memory_space<vmem>>) attributes {dimension_semantics = [#tpu.dimension_semantics<parallel>, #tpu.dimension_semantics<arbitrary>], iteration_bounds = array<i64: 2, 1>, scalar_prefetch = 0 : i64, scratch_operands = 1 : i64, tpu.core_type = #tpu.core_type<tc>, window_params = [{transform_indices = @transform_0, window_bounds = array<i64: 8, 128>}, {transform_indices = @transform_1, window_bounds = array<i64: 128, 128>}, {transform_indices = @transform_2, window_bounds = array<i64: 1, 128>}, {transform_indices = @transform_3, window_bounds = array<i64: 128, 128>}, {pipeline_mode = #tpu.pipeline_mode<synchronous>, transform_indices = @transform_4, window_bounds = array<i64: 1, 128>}, {pipeline_mode = #tpu.pipeline_mode<synchronous>, transform_indices = @transform_5, window_bounds = array<i64: 1, 128>}, {pipeline_mode = #tpu.pipeline_mode<synchronous>, transform_indices = @transform_6, window_bounds = array<i64: 1, 128>}, {transform_indices = @transform_7, window_bounds = array<i64: 8, 128>}]} {
    %c0_i32 = arith.constant 0 : i32
    %0 = arith.cmpi eq, %arg1, %c0_i32 : i32
    %1 = arith.extui %0 : i1 to i32
    %c0_i32_0 = arith.constant 0 : i32
    %2 = arith.cmpi ne, %1, %c0_i32_0 : i32
    scf.if %2 {
      %cst_16 = arith.constant 0.000000e+00 : f32
      %20 = vector.broadcast %cst_16 : f32 to vector<8x128xf32>
      %c0_17 = arith.constant 0 : index
      %c0_18 = arith.constant 0 : index
      %21 = vector.load %arg10[%c0_17, %c0_18] : memref<8x128xf32, #tpu.memory_space<vmem>>, vector<8x128xf32>
      tpu.vector_store %arg10[%c0_17, %c0_18], %20 {strides = array<i32>} : memref<8x128xf32, #tpu.memory_space<vmem>>, vector<8x128xf32>,
    } else {
    }
    %c0 = arith.constant 0 : index
    %c0_1 = arith.constant 0 : index
    %3 = vector.load %arg2[%c0, %c0_1] : memref<8x128xbf16, #tpu.memory_space<vmem>>, vector<8x128xbf16>
    %c0_2 = arith.constant 0 : index
    %c0_3 = arith.constant 0 : index
    %4 = vector.load %arg3[%c0_2, %c0_3] : memref<128x128xbf16, #tpu.memory_space<vmem>>, vector<128x128xbf16>
    %cst = arith.constant dense<0.000000e+00> : vector<8x128xf32>
    %5 = tpu.matmul %3, %4, %cst {dimension_numbers = #tpu.dot_dimension_numbers<[1], [0], [0], [1], [0, 0, 1, 1], [], []>} : vector<8x128xbf16>, vector<128x128xbf16>, vector<8x128xf32> -> vector<8x128xf32>
    %c0_4 = arith.constant 0 : index
    %c0_5 = arith.constant 0 : index
    %6 = vector.load %arg4[%c0_4, %c0_5] : memref<1x128xf32, #tpu.memory_space<vmem>>, vector<1x128xf32>
    %7 = vector.broadcast %6 : vector<1x128xf32> to vector<8x128xf32>
    %8 = arith.addf %5, %7 : vector<8x128xf32>
    %cst_6 = arith.constant 0.000000e+00 : f32
    %9 = vector.broadcast %cst_6 : f32 to vector<8x128xf32>
    %10 = arith.maximumf %8, %9 : vector<8x128xf32>
    %c0_7 = arith.constant 0 : index
    %c0_8 = arith.constant 0 : index
    %11 = vector.load %arg10[%c0_7, %c0_8] : memref<8x128xf32, #tpu.memory_space<vmem>>, vector<8x128xf32>
    %12 = arith.truncf %10 : vector<8x128xf32> to vector<8x128xbf16>
    %c0_9 = arith.constant 0 : index
    %c0_10 = arith.constant 0 : index
    %13 = vector.load %arg5[%c0_9, %c0_10] : memref<128x128xbf16, #tpu.memory_space<vmem>>, vector<128x128xbf16>
    %cst_11 = arith.constant dense<0.000000e+00> : vector<8x128xf32>
    %14 = tpu.matmul %12, %13, %cst_11 {dimension_numbers = #tpu.dot_dimension_numbers<[1], [0], [0], [1], [0, 0, 1, 1], [], []>} : vector<8x128xbf16>, vector<128x128xbf16>, vector<8x128xf32> -> vector<8x128xf32>
    %15 = arith.addf %11, %14 : vector<8x128xf32>
    %c0_12 = arith.constant 0 : index
    %c0_13 = arith.constant 0 : index
    %16 = vector.load %arg10[%c0_12, %c0_13] : memref<8x128xf32, #tpu.memory_space<vmem>>, vector<8x128xf32>
    tpu.vector_store %arg10[%c0_12, %c0_13], %15 {strides = array<i32>} : memref<8x128xf32, #tpu.memory_space<vmem>>, vector<8x128xf32>,
    %c0_i32_14 = arith.constant 0 : i32
    %17 = arith.cmpi eq, %arg1, %c0_i32_14 : i32
    %18 = arith.extui %17 : i1 to i32
    %c0_i32_15 = arith.constant 0 : i32
    %19 = arith.cmpi ne, %18, %c0_i32_15 : i32
    scf.if %19 {
      %c0_16 = arith.constant 0 : index
      %c0_17 = arith.constant 0 : index
      %20 = vector.load %arg10[%c0_16, %c0_17] : memref<8x128xf32, #tpu.memory_space<vmem>>, vector<8x128xf32>
      %c0_18 = arith.constant 0 : index
      %c0_19 = arith.constant 0 : index
      %21 = vector.load %arg6[%c0_18, %c0_19] : memref<1x128xf32, #tpu.memory_space<vmem>>, vector<1x128xf32>
      %c0_20 = arith.constant 0 : index
      %c0_21 = arith.constant 0 : index
      %22 = vector.load %arg2[%c0_20, %c0_21] : memref<8x128xbf16, #tpu.memory_space<vmem>>, vector<8x128xbf16>
      %23 = arith.extf %22 : vector<8x128xbf16> to vector<8x128xf32>
      %24 = vector.broadcast %21 : vector<1x128xf32> to vector<8x128xf32>
      %25 = arith.addf %24, %23 : vector<8x128xf32>
      %26 = arith.addf %20, %25 : vector<8x128xf32>
      %c0_22 = arith.constant 0 : index
      %c0_23 = arith.constant 0 : index
      %27 = vector.load %arg10[%c0_22, %c0_23] : memref<8x128xf32, #tpu.memory_space<vmem>>, vector<8x128xf32>
      tpu.vector_store %arg10[%c0_22, %c0_23], %26 {strides = array<i32>} : memref<8x128xf32, #tpu.memory_space<vmem>>, vector<8x128xf32>,
      %c0_24 = arith.constant 0 : index
      %c0_25 = arith.constant 0 : index
      %28 = vector.load %arg10[%c0_24, %c0_25] : memref<8x128xf32, #tpu.memory_space<vmem>>, vector<8x128xf32>
      %cst_26 = arith.constant dense<0.000000e+00> : vector<8xf32>
      %29 = vector.multi_reduction <add>, %28, %cst_26 [1] : vector<8x128xf32> to vector<8xf32>
      %30 = vector.shape_cast %29 : vector<8xf32> to vector<8x1xf32>
      %cst_27 = arith.constant 3.125000e-02 : f32
      %31 = vector.broadcast %cst_27 : f32 to vector<8x1xf32>
      %32 = arith.mulf %30, %31 : vector<8x1xf32>
      %33 = tpu.iota {dimensions = array<i32: 1>} : vector<8x128xi32>
      %c32_i32 = arith.constant 32 : i32
      %34 = vector.broadcast %c32_i32 : i32 to vector<8x128xi32>
      %35 = arith.cmpi slt, %33, %34 : vector<8x128xi32>
      %36 = vector.broadcast %32 : vector<8x1xf32> to vector<8x128xf32>
      %37 = arith.subf %28, %36 : vector<8x128xf32>
      %cst_28 = arith.constant 0.000000e+00 : f32
      %38 = vector.broadcast %cst_28 : f32 to vector<8x128xf32>
      %39 = arith.select %35, %37, %38 : vector<8x128xi1>, vector<8x128xf32>
      %40 = arith.mulf %39, %39 : vector<8x128xf32>
      %cst_29 = arith.constant dense<0.000000e+00> : vector<8xf32>
      %41 = vector.multi_reduction <add>, %40, %cst_29 [1] : vector<8x128xf32> to vector<8xf32>
      %42 = vector.shape_cast %41 : vector<8xf32> to vector<8x1xf32>
      %cst_30 = arith.constant 3.125000e-02 : f32
      %43 = vector.broadcast %cst_30 : f32 to vector<8x1xf32>
      %44 = arith.mulf %42, %43 : vector<8x1xf32>
      %cst_31 = arith.constant 9.99999974E-6 : f32
      %45 = vector.broadcast %cst_31 : f32 to vector<8x1xf32>
      %46 = arith.addf %44, %45 : vector<8x1xf32>
      %47 = math.rsqrt %46 : vector<8x1xf32>
      %48 = vector.broadcast %47 : vector<8x1xf32> to vector<8x128xf32>
      %49 = arith.mulf %39, %48 : vector<8x128xf32>
      %c0_32 = arith.constant 0 : index
      %c0_33 = arith.constant 0 : index
      %50 = vector.load %arg7[%c0_32, %c0_33] : memref<1x128xf32, #tpu.memory_space<vmem>>, vector<1x128xf32>
      %51 = vector.broadcast %50 : vector<1x128xf32> to vector<8x128xf32>
      %52 = arith.mulf %49, %51 : vector<8x128xf32>
      %c0_34 = arith.constant 0 : index
      %c0_35 = arith.constant 0 : index
      %53 = vector.load %arg8[%c0_34, %c0_35] : memref<1x128xf32, #tpu.memory_space<vmem>>, vector<1x128xf32>
      %54 = vector.broadcast %53 : vector<1x128xf32> to vector<8x128xf32>
      %55 = arith.addf %52, %54 : vector<8x128xf32>
      %c0_36 = arith.constant 0 : index
      %c0_37 = arith.constant 0 : index
      %56 = vector.load %arg9[%c0_36, %c0_37] : memref<8x128xf32, #tpu.memory_space<vmem>>, vector<8x128xf32>
      tpu.vector_store %arg9[%c0_36, %c0_37], %55 {strides = array<i32>} : memref<8x128xf32, #tpu.memory_space<vmem>>, vector<8x128xf32>,
    } else {
    }
    return
  }
  func.func @transform_0(%arg0: i32, %arg1: i32) -> (i32, i32) {
    %c0_i32 = arith.constant 0 : i32
    %c0_i32_0 = arith.constant 0 : i32
    return %arg0, %c0_i32 : i32, i32
  }
  func.func @transform_1(%arg0: i32, %arg1: i32) -> (i32, i32) {
    %c0_i32 = arith.constant 0 : i32
    %c0_i32_0 = arith.constant 0 : i32
    return %c0_i32, %arg1 : i32, i32
  }
  func.func @transform_2(%arg0: i32, %arg1: i32) -> (i32, i32) {
    %c0_i32 = arith.constant 0 : i32
    %c0_i32_0 = arith.constant 0 : i32
    return %c0_i32, %arg1 : i32, i32
  }
  func.func @transform_3(%arg0: i32, %arg1: i32) -> (i32, i32) {
    %c0_i32 = arith.constant 0 : i32
    %c0_i32_0 = arith.constant 0 : i32
    return %arg1, %c0_i32 : i32, i32
  }
  func.func @transform_4(%arg0: i32, %arg1: i32) -> (i32, i32) {
    %c0_i32 = arith.constant 0 : i32
    %c0_i32_0 = arith.constant 0 : i32
    %c0_i32_1 = arith.constant 0 : i32
    return %c0_i32, %c0_i32_0 : i32, i32
  }
  func.func @transform_5(%arg0: i32, %arg1: i32) -> (i32, i32) {
    %c0_i32 = arith.constant 0 : i32
    %c0_i32_0 = arith.constant 0 : i32
    %c0_i32_1 = arith.constant 0 : i32
    return %c0_i32, %c0_i32_0 : i32, i32
  }
  func.func @transform_6(%arg0: i32, %arg1: i32) -> (i32, i32) {
    %c0_i32 = arith.constant 0 : i32
    %c0_i32_0 = arith.constant 0 : i32
    %c0_i32_1 = arith.constant 0 : i32
    return %c0_i32, %c0_i32_0 : i32, i32
  }
  func.func @transform_7(%arg0: i32, %arg1: i32) -> (i32, i32) {
    %c0_i32 = arith.constant 0 : i32
    %c0_i32_0 = arith.constant 0 : i32
    return %arg0, %c0_i32 : i32, i32
  }
}

</mosaic_0001>

<llo_original>
// kernel: tpu_custom_call.1
$region0: #{tpu_custom_call.1}
  #allocation0 [shape = 'u32[]', space=smem, size = 0x4, offset = 0x4, fixed_abs, tag = 'smem constant byte address 0x4 - core index']
  #allocation1 [shape = 'u32[72,128]{1,0:T(1,128)}', space=vmem, size = 0x9000, scoped, tag = 'internal scratch']
  #allocation2 [shape = 'f32[8,128]{1,0:T(8,128)}', space=vmem, size = 0x1000, scoped, tag = 'scratch operand']
  %s0 = inlined_call_operand.hbm [shape: bf16[16,128], index: 0, kind: input, shape index: {}]
  %s1 = inlined_call_operand.hbm [shape: bf16[128,128], index: 1, kind: input, shape index: {}]
  %s2 = inlined_call_operand.vmem [shape: f32[1,128], index: 2, kind: input, shape index: {}]
  %s3 = inlined_call_operand.hbm [shape: bf16[128,128], index: 3, kind: input, shape index: {}]
  %s4 = inlined_call_operand.vmem [shape: f32[1,128], index: 4, kind: input, shape index: {}]
  %s5 = inlined_call_operand.vmem [shape: f32[1,128], index: 5, kind: input, shape index: {}]
  %s6 = inlined_call_operand.vmem [shape: f32[1,128], index: 6, kind: input, shape index: {}]
  %s7 = inlined_call_operand.hbm [shape: f32[16,128], index: 7, kind: output, shape index: {}]
  %s8 = sld [smem:[#allocation0]]
  $region81: #{tpu_custom_call.1} parent=0
    _
  %s10 = ssub.s32 1, %s8
  %s11 = scalar_select 0, %s10, %s8
  $region1: #{tpu_custom_call.1} parent=0
    #allocation3 [shape = 'u8[4096]{0}', space=vmem, size = 0x1000, scoped, tag = 'input window, operand 0']
    #allocation4 [shape = 's32[2]{0}', space=sflag, size = 0x8, scoped, tag = 'scoped memory for tpu_custom_call.1']
    #allocation5 [shape = 's32[2]{0}', space=sflag, size = 0x8, scoped, tag = 'scoped memory for tpu_custom_call.1']
    #allocation6 [shape = 'u8[32768]{0}', space=vmem, size = 0x8000, scoped, tag = 'input window, operand 1, single buffered']
    #allocation7 [shape = 's32[1]{0}', space=sflag, size = 0x4, scoped, tag = 'scoped memory for tpu_custom_call.1']
    #allocation8 [shape = 'u8[32768]{0}', space=vmem, size = 0x8000, scoped, tag = 'input window, operand 3, single buffered']
    #allocation9 [shape = 'u8[8192]{0}', space=vmem, size = 0x2000, scoped, tag = 'output window, operand 0']
    %12 = vsyncpa [#allocation4], 0
    %s13 = scalar_lea.sflag [#allocation4], 1
    %14 = vsyncpa %s13, 0
    %15 = vsyncpa [#allocation7], 0
    %16 = vsyncpa [#allocation5], 0
    %s17 = scalar_lea.sflag [#allocation5], 1
    %18 = vsyncpa %s17, 0
    loop: start=0, step=1, limit=4
    $region2: #{tpu_custom_call.1} parent=1 // loop_pre_header
      _
    $region3: #{tpu_custom_call.1} parent=1 // loop_header
      %s20 = sphi 0, %s24
      %p21 = scmp.ge.s32.totalorder %s20, 4
      %s27 = sphi 0, %s39
      %s28 = sphi 0, %s35
      %s29 = sphi 0, %s27
      %s30 = sphi 0, %s28
      %s31 = sphi 0, %s29
      %s32 = sphi 0, %s30
      %s42 = sphi 0, %s44
      %s45 = sphi 0, %s42
      %s46 = sphi 0, %s45
      %s62 = sphi 0, %s46
      %s68 = sphi 0, %s70
      %s71 = sphi 0, %s68
      %s72 = sphi 0, %s71
      %s88 = sphi 0, %s72
      %s94 = sphi 0, %s96
      %s97 = sphi 0, %s94
      %s98 = sphi 0, %s97
      %s114 = sphi 0, %s98
      %s120 = sphi 0, %s122
      %s123 = sphi 0, %s120
      %s124 = sphi 0, %s123
      %s140 = sphi 0, %s124
      %s144 = sphi 0, %s144
      %s146 = sphi 0, %s144
      %s147 = sphi 0, %s146
      %s161 = sphi 0, %s147
      %s165 = sphi 0, %s165
      %s167 = sphi 0, %s165
      %s168 = sphi 0, %s167
      %s182 = sphi 0, %s168
      %s186 = sphi 0, %s186
      %s188 = sphi 0, %s186
      %s189 = sphi 0, %s188
      %s203 = sphi 0, %s189
      %s209 = sphi 0, %s211
      %s212 = sphi 0, %s209
      %s213 = sphi 0, %s212
      %s229 = sphi 0, %s213
    $region4: #{tpu_custom_call.1} parent=1 // loop_header_branch
      %23 = sbr.rel (%p21) target = $region8
    $region5: #{tpu_custom_call.1} parent=1 // loop_body
      %s25 = ssub.s32 %s20, 1
      %s26 = ssub.s32 %s20, 2
      %s33 = sadd.s32 1, %s28
      %p34 = scmp.ge.s32.totalorder %s33, 1
      %s35 = scalar_select %p34, 0, %s33
      %s36 = sadd.s32 1, %s27
      %s37 = scalar_select %p34, %s36, %s27
      %p38 = scmp.ge.s32.totalorder %s37, 2
      %s39 = scalar_select %p38, 0, %s37
      %s40 = ssub.s32 %s27, %s39
      %p41 = scmp.eq.s32.totalorder %s40, 0
      %s43 = sadd.s32 %s42, 1
      %s44 = scalar_select %p41, %s42, %s43
      %p47 = pneg %p41
      %p48 = scmp.eq.s32.totalorder %s20, 1
      %p49 = por %p47, %p48
      %p50 = scmp.ne.s32.totalorder %s42, %s45
      %p51 = scmp.eq.s32.totalorder %s20, 0
      %p52 = por %p50, %p51
      %p53 = scmp.ne.s32.totalorder %s42, %s45
      %p54 = scmp.eq.s32.totalorder %s25, 1
      %p55 = por %p53, %p54
      %p56 = scmp.ne.s32.totalorder %s45, %s46
      %p57 = scmp.eq.s32.totalorder %s25, 0
      %p58 = por %p56, %p57
      %p59 = scmp.ne.s32.totalorder %s45, %s46
      %p60 = scmp.eq.s32.totalorder %s26, 1
      %p61 = por %p59, %p60
      %p63 = scmp.ne.s32.totalorder %s46, %s62
      %p64 = scmp.eq.s32.totalorder %s26, 0
      %p65 = por %p63, %p64
      %s66 = ssub.s32 %s28, %s35
      %p67 = scmp.eq.s32.totalorder %s66, 0
      %s69 = sadd.s32 %s68, 1
      %s70 = scalar_select %p67, %s68, %s69
      %p73 = pneg %p67
      %p74 = scmp.eq.s32.totalorder %s20, 1
      %p75 = por %p73, %p74
      %p76 = scmp.ne.s32.totalorder %s68, %s71
      %p77 = scmp.eq.s32.totalorder %s20, 0
      %p78 = por %p76, %p77
      %p79 = scmp.ne.s32.totalorder %s68, %s71
      %p80 = scmp.eq.s32.totalorder %s25, 1
      %p81 = por %p79, %p80
      %p82 = scmp.ne.s32.totalorder %s71, %s72
      %p83 = scmp.eq.s32.totalorder %s25, 0
      %p84 = por %p82, %p83
      %p85 = scmp.ne.s32.totalorder %s71, %s72
      %p86 = scmp.eq.s32.totalorder %s26, 1
      %p87 = por %p85, %p86
      %p89 = scmp.ne.s32.totalorder %s72, %s88
      %p90 = scmp.eq.s32.totalorder %s26, 0
      %p91 = por %p89, %p90
      %s92 = ssub.s32 %s28, %s35
      %p93 = scmp.eq.s32.totalorder %s92, 0
      %s95 = sadd.s32 %s94, 1
      %s96 = scalar_select %p93, %s94, %s95
      %p99 = pneg %p93
      %p100 = scmp.eq.s32.totalorder %s20, 1
      %p101 = por %p99, %p100
      %p102 = scmp.ne.s32.totalorder %s94, %s97
      %p103 = scmp.eq.s32.totalorder %s20, 0
      %p104 = por %p102, %p103
      %p105 = scmp.ne.s32.totalorder %s94, %s97
      %p106 = scmp.eq.s32.totalorder %s25, 1
      %p107 = por %p105, %p106
      %p108 = scmp.ne.s32.totalorder %s97, %s98
      %p109 = scmp.eq.s32.totalorder %s25, 0
      %p110 = por %p108, %p109
      %p111 = scmp.ne.s32.totalorder %s97, %s98
      %p112 = scmp.eq.s32.totalorder %s26, 1
      %p113 = por %p111, %p112
      %p115 = scmp.ne.s32.totalorder %s98, %s114
      %p116 = scmp.eq.s32.totalorder %s26, 0
      %p117 = por %p115, %p116
      %s118 = ssub.s32 %s28, %s35
      %p119 = scmp.eq.s32.totalorder %s118, 0
      %s121 = sadd.s32 %s120, 1
      %s122 = scalar_select %p119, %s120, %s121
      %p125 = pneg %p119
      %p126 = scmp.eq.s32.totalorder %s20, 1
      %p127 = por %p125, %p126
      %p128 = scmp.ne.s32.totalorder %s120, %s123
      %p129 = scmp.eq.s32.totalorder %s20, 0
      %p130 = por %p128, %p129
      %p131 = scmp.ne.s32.totalorder %s120, %s123
      %p132 = scmp.eq.s32.totalorder %s25, 1
      %p133 = por %p131, %p132
      %p134 = scmp.ne.s32.totalorder %s123, %s124
      %p135 = scmp.eq.s32.totalorder %s25, 0
      %p136 = por %p134, %p135
      %p137 = scmp.ne.s32.totalorder %s123, %s124
      %p138 = scmp.eq.s32.totalorder %s26, 1
      %p139 = por %p137, %p138
      %p141 = scmp.ne.s32.totalorder %s124, %s140
      %p142 = scmp.eq.s32.totalorder %s26, 0
      %p143 = por %p141, %p142
      %s145 = sadd.s32 %s144, 1
      %p148 = scmp.eq.s32.totalorder %s20, 1
      %p149 = scmp.ne.s32.totalorder %s144, %s146
      %p150 = scmp.eq.s32.totalorder %s20, 0
      %p151 = por %p149, %p150
      %p152 = scmp.ne.s32.totalorder %s144, %s146
      %p153 = scmp.eq.s32.totalorder %s25, 1
      %p154 = por %p152, %p153
      %p155 = scmp.ne.s32.totalorder %s146, %s147
      %p156 = scmp.eq.s32.totalorder %s25, 0
      %p157 = por %p155, %p156
      %p158 = scmp.ne.s32.totalorder %s146, %s147
      %p159 = scmp.eq.s32.totalorder %s26, 1
      %p160 = por %p158, %p159
      %p162 = scmp.ne.s32.totalorder %s147, %s161
      %p163 = scmp.eq.s32.totalorder %s26, 0
      %p164 = por %p162, %p163
      %s166 = sadd.s32 %s165, 1
      %p169 = scmp.eq.s32.totalorder %s20, 1
      %p170 = scmp.ne.s32.totalorder %s165, %s167
      %p171 = scmp.eq.s32.totalorder %s20, 0
      %p172 = por %p170, %p171
      %p173 = scmp.ne.s32.totalorder %s165, %s167
      %p174 = scmp.eq.s32.totalorder %s25, 1
      %p175 = por %p173, %p174
      %p176 = scmp.ne.s32.totalorder %s167, %s168
      %p177 = scmp.eq.s32.totalorder %s25, 0
      %p178 = por %p176, %p177
      %p179 = scmp.ne.s32.totalorder %s167, %s168
      %p180 = scmp.eq.s32.totalorder %s26, 1
      %p181 = por %p179, %p180
      %p183 = scmp.ne.s32.totalorder %s168, %s182
      %p184 = scmp.eq.s32.totalorder %s26, 0
      %p185 = por %p183, %p184
      %s187 = sadd.s32 %s186, 1
      %p190 = scmp.eq.s32.totalorder %s20, 1
      %p191 = scmp.ne.s32.totalorder %s186, %s188
      %p192 = scmp.eq.s32.totalorder %s20, 0
      %p193 = por %p191, %p192
      %p194 = scmp.ne.s32.totalorder %s186, %s188
      %p195 = scmp.eq.s32.totalorder %s25, 1
      %p196 = por %p194, %p195
      %p197 = scmp.ne.s32.totalorder %s188, %s189
      %p198 = scmp.eq.s32.totalorder %s25, 0
      %p199 = por %p197, %p198
      %p200 = scmp.ne.s32.totalorder %s188, %s189
      %p201 = scmp.eq.s32.totalorder %s26, 1
      %p202 = por %p200, %p201
      %p204 = scmp.ne.s32.totalorder %s189, %s203
      %p205 = scmp.eq.s32.totalorder %s26, 0
      %p206 = por %p204, %p205
      %s207 = ssub.s32 %s27, %s39
      %p208 = scmp.eq.s32.totalorder %s207, 0
      %s210 = sadd.s32 %s209, 1
      %s211 = scalar_select %p208, %s209, %s210
      %p214 = pneg %p208
      %p215 = scmp.eq.s32.totalorder %s20, 1
      %p216 = por %p214, %p215
      %p217 = scmp.ne.s32.totalorder %s209, %s212
      %p218 = scmp.eq.s32.totalorder %s20, 0
      %p219 = por %p217, %p218
      %p220 = scmp.ne.s32.totalorder %s209, %s212
      %p221 = scmp.eq.s32.totalorder %s25, 1
      %p222 = por %p220, %p221
      %p223 = scmp.ne.s32.totalorder %s212, %s213
      %p224 = scmp.eq.s32.totalorder %s25, 0
      %p225 = por %p223, %p224
      %p226 = scmp.ne.s32.totalorder %s212, %s213
      %p227 = scmp.eq.s32.totalorder %s26, 1
      %p228 = por %p226, %p227
      %p230 = scmp.ne.s32.totalorder %s213, %s229
      %p231 = scmp.eq.s32.totalorder %s26, 0
      %p232 = por %p230, %p231
      %p233 = scmp.le.s32.totalorder 1, %s20
      %p234 = scmp.lt.s32.totalorder %s20, 3
      %p235 = pnand %p233, %p234
      %p236 = pneg %p235
      // Predicated region
      $region9: #{tpu_custom_call.1} parent=5 // pred_check
        _
      $region10: #{tpu_custom_call.1} parent=5 // pred_check_branch
        %238 = sbr.rel (%p235) target = $region12
      $region11: #{tpu_custom_call.1} parent=5 // pred_region
        %s239 = ssub.s32 %s20, 1
        // Predicated region
        $region13: #{tpu_custom_call.1} parent=11 // pred_check
          %p240 = pneg %p84
        $region14: #{tpu_custom_call.1} parent=11 // pred_check_branch
          %242 = sbr.rel (%p240) target = $region16
        $region15: #{tpu_custom_call.1} parent=11 // pred_region
          %244 = vsyncadd [#allocation7], 0
          %s245 = smul.addr %s30, 4
          %s246 = scalar_lea.hbm %s1, %s245
          %s247 = sshll.u32 %s246, 4
          %s248 = int_to_ptr.hbm [resolvable:$true] %s247
          %s249 = sshll.u32 [#allocation6], 4
          %s250 = int_to_ptr.vmem [resolvable:$true] %s249
          %255 = dma.hbm_to_vmem [thread:$0]  %s248, 1024, %s250, [#allocation7], 64, 64, 4
        $region16: #{tpu_custom_call.1} parent=11 // pred_fallthru
          _
        // Predicated region
        $region17: #{tpu_custom_call.1} parent=11 // pred_check
          %p256 = pneg %p110
        $region18: #{tpu_custom_call.1} parent=11 // pred_check_branch
          %258 = sbr.rel (%p256) target = $region20
        $region19: #{tpu_custom_call.1} parent=11 // pred_region
          %p259 = scmp.lt.s32.totalorder %s30, 0
          %s260 = scalar_select %p259, %s30, 0
          %s261 = scalar_lea.vmem %s2, %s260
        $region20: #{tpu_custom_call.1} parent=11 // pred_fallthru
          _
        // Predicated region
        $region21: #{tpu_custom_call.1} parent=11 // pred_check
          %p262 = pneg %p136
        $region22: #{tpu_custom_call.1} parent=11 // pred_check_branch
          %264 = sbr.rel (%p262) target = $region24
        $region23: #{tpu_custom_call.1} parent=11 // pred_region
          %s265 = smul.u32 16, %s30
          %267 = vsyncadd [#allocation7], 0
          %s268 = smul.addr %s265, 4
          %s269 = scalar_lea.hbm %s3, %s268
          %s270 = sshll.u32 %s269, 4
          %s271 = int_to_ptr.hbm [resolvable:$true] %s270
          %s272 = sshll.u32 [#allocation8], 4
          %s273 = int_to_ptr.vmem [resolvable:$true] %s272
          %278 = dma.hbm_to_vmem [thread:$0]  %s271, 1024, %s273, [#allocation7], 64, 64, 4
        $region24: #{tpu_custom_call.1} parent=11 // pred_fallthru
          _
        // Predicated region
        $region25: #{tpu_custom_call.1} parent=11 // pred_check
          %p279 = pneg %p157
        $region26: #{tpu_custom_call.1} parent=11 // pred_check_branch
          %281 = sbr.rel (%p279) target = $region28
        $region27: #{tpu_custom_call.1} parent=11 // pred_region
          _
        $region28: #{tpu_custom_call.1} parent=11 // pred_fallthru
          _
        // Predicated region
        $region29: #{tpu_custom_call.1} parent=11 // pred_check
          %p282 = pneg %p178
        $region30: #{tpu_custom_call.1} parent=11 // pred_check_branch
          %284 = sbr.rel (%p282) target = $region32
        $region31: #{tpu_custom_call.1} parent=11 // pred_region
          _
        $region32: #{tpu_custom_call.1} parent=11 // pred_fallthru
          _
        // Predicated region
        $region33: #{tpu_custom_call.1} parent=11 // pred_check
          %p285 = pneg %p199
        $region34: #{tpu_custom_call.1} parent=11 // pred_check_branch
          %287 = sbr.rel (%p285) target = $region36
        $region35: #{tpu_custom_call.1} parent=11 // pred_region
          _
        $region36: #{tpu_custom_call.1} parent=11 // pred_fallthru
          _
      $region12: #{tpu_custom_call.1} parent=5 // pred_fallthru
        _
      %p288 = scmp.lt.s32.totalorder %s20, 2
      // Predicated region
      $region37: #{tpu_custom_call.1} parent=5 // pred_check
        %p289 = pneg %p288
      $region38: #{tpu_custom_call.1} parent=5 // pred_check_branch
        %291 = sbr.rel (%p289) target = $region40
      $region39: #{tpu_custom_call.1} parent=5 // pred_region
        // Predicated region
        $region41: #{tpu_custom_call.1} parent=39 // pred_check
          %p292 = pneg %p52
        $region42: #{tpu_custom_call.1} parent=39 // pred_check_branch
          %294 = sbr.rel (%p292) target = $region44
        $region43: #{tpu_custom_call.1} parent=39 // pred_region
          %s295 = sand.u32 %s42, 1
          %s296 = scalar_lea.sflag [#allocation4], %s295
          %s297 = sand.u32 %s42, 1
          %s298 = smul.addr %s297, 4
          %s299 = scalar_lea.vmem [#allocation3], %s298
          %301 = vsyncadd %s296, 0
          %s302 = smul.addr %s27, 4
          %s303 = scalar_lea.hbm %s0, %s302
          %s305 = sshll.u32 %s303, 4
          %s306 = int_to_ptr.hbm [resolvable:$true] %s305
          %s307 = sshll.u32 %s299, 4
          %s308 = int_to_ptr.vmem [resolvable:$true] %s307
          %310 = dma.hbm_to_vmem [thread:$0]  %s306, 64, %s308, %s296
        $region44: #{tpu_custom_call.1} parent=39 // pred_fallthru
          _
      $region40: #{tpu_custom_call.1} parent=5 // pred_fallthru
        _
      %p311 = scmp.le.s32.totalorder 1, %s20
      %p312 = scmp.lt.s32.totalorder %s20, 3
      %p313 = pnand %p311, %p312
      %p314 = pneg %p313
      // Predicated region
      $region45: #{tpu_custom_call.1} parent=5 // pred_check
        _
      $region46: #{tpu_custom_call.1} parent=5 // pred_check_branch
        %316 = sbr.rel (%p313) target = $region48
      $region47: #{tpu_custom_call.1} parent=5 // pred_region
        %s317 = ssub.s32 %s20, 1
        %s318 = sand.u32 %s45, 1
        %s319 = scalar_lea.sflag [#allocation4], %s318
        %s320 = sand.u32 %s45, 1
        %s321 = smul.addr %s320, 4
        %s322 = scalar_lea.vmem [#allocation3], %s321
        // Predicated region
        $region49: #{tpu_custom_call.1} parent=47 // pred_check
          %p323 = pneg %p58
        $region50: #{tpu_custom_call.1} parent=47 // pred_check_branch
          %325 = sbr.rel (%p323) target = $region52
        $region51: #{tpu_custom_call.1} parent=47 // pred_region
          %327 = dma.done %s319, 64
        $region52: #{tpu_custom_call.1} parent=47 // pred_fallthru
          _
        // Predicated region
        $region53: #{tpu_custom_call.1} parent=47 // pred_check
          %p328 = pneg %p84
        $region54: #{tpu_custom_call.1} parent=47 // pred_check_branch
          %330 = sbr.rel (%p328) target = $region56
        $region55: #{tpu_custom_call.1} parent=47 // pred_region
          %332 = dma.done [#allocation7], 1024
        $region56: #{tpu_custom_call.1} parent=47 // pred_fallthru
          _
        // Predicated region
        $region57: #{tpu_custom_call.1} parent=47 // pred_check
          %p333 = pneg %p136
        $region58: #{tpu_custom_call.1} parent=47 // pred_check_branch
          %335 = sbr.rel (%p333) target = $region60
        $region59: #{tpu_custom_call.1} parent=47 // pred_region
          %337 = dma.done [#allocation7], 1024
        $region60: #{tpu_custom_call.1} parent=47 // pred_fallthru
          _
        %s338 = sand.u32 %s45, 1
        %s339 = scalar_lea.sflag [#allocation4], %s338
        %s340 = sand.u32 %s45, 1
        %s341 = smul.addr %s340, 4
        %s342 = scalar_lea.vmem [#allocation3], %s341
        %p343 = pneg %p58
        %p344 = pneg %p55
        %p345 = pneg %p84
        %p346 = pneg %p81
        %p347 = scmp.lt.s32.totalorder %s30, 0
        %s348 = scalar_select %p347, %s30, 0
        %s349 = scalar_lea.vmem %s2, %s348
        %p350 = pneg %p110
        %p351 = pneg %p107
        %p352 = pneg %p136
        %p353 = pneg %p133
        %p354 = pneg %p157
        %p355 = pneg %p154
        %p356 = pneg %p178
        %p357 = pneg %p175
        %p358 = pneg %p199
        %p359 = pneg %p196
        %p360 = pneg %p225
        %p361 = pneg %p222
        %s362 = sand.u32 %s212, 1
        %s363 = scalar_lea.sflag [#allocation5], %s362
        %s364 = sand.u32 %s212, 1
        %s365 = smul.addr %s364, 8
        %s366 = scalar_lea.vmem [#allocation9], %s365
        %p367 = scmp.lt.s32.totalorder %s30, 0
        %s368 = scalar_select %p367, %s30, 0
        %s369 = scalar_lea.vmem %s2, %s368
        %s370 = smul.u32 16, %s30
        %p371 = scmp.eq.s32.totalorder %s30, 0
        // Predicated region
        $region61: #{tpu_custom_call.1} parent=47 // pred_check
          %p372 = pneg %p371
        $region62: #{tpu_custom_call.1} parent=47 // pred_check_branch
          %374 = sbr.rel (%p372) target = $region64
        $region63: #{tpu_custom_call.1} parent=47 // pred_region
          %375 = vst [vmem:[#allocation2] sm:$0xff] 0.0
        $region64: #{tpu_custom_call.1} parent=47 // pred_fallthru
          _
        %v376 = vld [vmem:[%s322] sm:$0xf]
        %v377 = vld [vmem:[#allocation6] sm:$0xf]
        %v378 = vld [vmem:[#allocation6 + $0x4] sm:$0xf]
        %v379 = vld [vmem:[#allocation6 + $0x8] sm:$0xf]
        %v380 = vld [vmem:[#allocation6 + $0xc] sm:$0xf]
        %v381 = vld [vmem:[#allocation6 + $0x10] sm:$0xf]
        %v382 = vld [vmem:[#allocation6 + $0x14] sm:$0xf]
        %v383 = vld [vmem:[#allocation6 + $0x18] sm:$0xf]
        %v384 = vld [vmem:[#allocation6 + $0x1c] sm:$0xf]
        %v385 = vld [vmem:[#allocation6 + $0x20] sm:$0xf]
        %v386 = vld [vmem:[#allocation6 + $0x24] sm:$0xf]
        %v387 = vld [vmem:[#allocation6 + $0x28] sm:$0xf]
        %v388 = vld [vmem:[#allocation6 + $0x2c] sm:$0xf]
        %v389 = vld [vmem:[#allocation6 + $0x30] sm:$0xf]
        %v390 = vld [vmem:[#allocation6 + $0x34] sm:$0xf]
        %v391 = vld [vmem:[#allocation6 + $0x38] sm:$0xf]
        %v392 = vld [vmem:[#allocation6 + $0x3c] sm:$0xf]
        %v393 = vld [vmem:[%s369] sm:$0x1]
        %v395 = vperm.slane %v393, 0
        %v413 = vunpack.c.l.b16 %v377
        %v414 = vunpack.c.l.b16 %v378
        %v415 = vunpack.c.l.b16 %v379
        %v416 = vunpack.c.l.b16 %v380
        %v417 = vunpack.c.l.b16 %v381
        %v418 = vunpack.c.l.b16 %v382
        %v419 = vunpack.c.l.b16 %v383
        %v420 = vunpack.c.l.b16 %v384
        %v421 = vunpack.c.l.b16 %v385
        %v422 = vunpack.c.l.b16 %v386
        %v423 = vunpack.c.l.b16 %v387
        %v424 = vunpack.c.l.b16 %v388
        %v425 = vunpack.c.l.b16 %v389
        %v426 = vunpack.c.l.b16 %v390
        %v427 = vunpack.c.l.b16 %v391
        %v428 = vunpack.c.l.b16 %v392
        %v429 = vpack.c.b16 %v414, %v413
        %v430 = vpack.c.b16 %v416, %v415
        %v431 = vpack.c.b16 %v418, %v417
        %v432 = vpack.c.b16 %v420, %v419
        %v433 = vpack.c.b16 %v422, %v421
        %v434 = vpack.c.b16 %v424, %v423
        %v435 = vpack.c.b16 %v426, %v425
        %v436 = vpack.c.b16 %v428, %v427
        %445 = vmatpush.bf16.msra.mxu0 %v436
        %446 = vmatpush.bf16.msra.mxu0 %v435
        %447 = vmatpush.bf16.msra.mxu0 %v434
        %448 = vmatpush.bf16.msra.mxu0 %v433
        %449 = vmatpush.bf16.msra.mxu0 %v432
        %450 = vmatpush.bf16.msra.mxu0 %v431
        %451 = vmatpush.bf16.msra.mxu0 %v430
        %452 = vmatpush.bf16.msra.mxu0 %v429
        %453 = vmatmul.bf16.gmra.mxu0 %v376
        %v454 = vpop.f32.mrf.mxu0
        %v455 = vadd.f32 %v395, %v454
        %v456 = vpop.f32.mrf.mxu0
        %457 = vdwg.mxu0
        %v458 = vmax.f32 %v455, 0.0
        %v459 = vld [vmem:[#allocation2] sm:$0xff]
        %v460 = vpack.c.bf16 %v458, %v458
        %v461 = vld [vmem:[#allocation8] sm:$0xf]
        %v462 = vld [vmem:[#allocation8 + $0x4] sm:$0xf]
        %v463 = vld [vmem:[#allocation8 + $0x8] sm:$0xf]
        %v464 = vld [vmem:[#allocation8 + $0xc] sm:$0xf]
        %v465 = vld [vmem:[#allocation8 + $0x10] sm:$0xf]
        %v466 = vld [vmem:[#allocation8 + $0x14] sm:$0xf]
        %v467 = vld [vmem:[#allocation8 + $0x18] sm:$0xf]
        %v468 = vld [vmem:[#allocation8 + $0x1c] sm:$0xf]
        %v469 = vld [vmem:[#allocation8 + $0x20] sm:$0xf]
        %v470 = vld [vmem:[#allocation8 + $0x24] sm:$0xf]
        %v471 = vld [vmem:[#allocation8 + $0x28] sm:$0xf]
        %v472 = vld [vmem:[#allocation8 + $0x2c] sm:$0xf]
        %v473 = vld [vmem:[#allocation8 + $0x30] sm:$0xf]
        %v474 = vld [vmem:[#allocation8 + $0x34] sm:$0xf]
        %v475 = vld [vmem:[#allocation8 + $0x38] sm:$0xf]
        %v476 = vld [vmem:[#allocation8 + $0x3c] sm:$0xf]
        %v493 = vunpack.c.l.b16 %v461
        %v494 = vunpack.c.l.b16 %v462
        %v495 = vunpack.c.l.b16 %v463
        %v496 = vunpack.c.l.b16 %v464
        %v497 = vunpack.c.l.b16 %v465
        %v498 = vunpack.c.l.b16 %v466
        %v499 = vunpack.c.l.b16 %v467
        %v500 = vunpack.c.l.b16 %v468
        %v501 = vunpack.c.l.b16 %v469
        %v502 = vunpack.c.l.b16 %v470
        %v503 = vunpack.c.l.b16 %v471
        %v504 = vunpack.c.l.b16 %v472
        %v505 = vunpack.c.l.b16 %v473
        %v506 = vunpack.c.l.b16 %v474
        %v507 = vunpack.c.l.b16 %v475
        %v508 = vunpack.c.l.b16 %v476
        %v509 = vpack.c.b16 %v494, %v493
        %v510 = vpack.c.b16 %v496, %v495
        %v511 = vpack.c.b16 %v498, %v497
        %v512 = vpack.c.b16 %v500, %v499
        %v513 = vpack.c.b16 %v502, %v501
        %v514 = vpack.c.b16 %v504, %v503
        %v515 = vpack.c.b16 %v506, %v505
        %v516 = vpack.c.b16 %v508, %v507
        %525 = vmatpush.bf16.msra.mxu0 %v516
        %526 = vmatpush.bf16.msra.mxu0 %v515
        %527 = vmatpush.bf16.msra.mxu0 %v514
        %528 = vmatpush.bf16.msra.mxu0 %v513
        %529 = vmatpush.bf16.msra.mxu0 %v512
        %530 = vmatpush.bf16.msra.mxu0 %v511
        %531 = vmatpush.bf16.msra.mxu0 %v510
        %532 = vmatpush.bf16.msra.mxu0 %v509
        %533 = vmatmul.bf16.gmra.mxu0 %v460
        %v534 = vpop.f32.mrf.mxu0
        %v535 = vadd.f32 0.0, %v534
        %v536 = vpop.f32.mrf.mxu0
        %537 = vdwg.mxu0
        %v538 = vadd.f32 %v459, %v535
        %539 = vst [vmem:[#allocation2] sm:$0xff] %v538
        // Predicated region
        $region65: #{tpu_custom_call.1} parent=47 // pred_check
          %p540 = pneg %p371
        $region66: #{tpu_custom_call.1} parent=47 // pred_check_branch
          %542 = sbr.rel (%p540) target = $region68
        $region67: #{tpu_custom_call.1} parent=47 // pred_region
          %v543 = vld [vmem:[#allocation2] sm:$0xff]
          %v544 = vld [vmem:[%s4] sm:$0x1]
          %v545 = vld [vmem:[%s322] sm:$0xf]
          %v546 = vunpack.c.l.bf16 %v545
          %v548 = vperm.slane %v544, 0
          %v550 = vadd.f32 %v548, %v546
          %v551 = vadd.f32 %v543, %v550
          %552 = vst [vmem:[#allocation2] sm:$0xff] %v551
          %v553 = vld [vmem:[#allocation2] sm:$0xff]
          %554 = vadd.xlane.f32.xlu0 %v553
          %v555 = vpop.xlane.xlu0 %554
          %v556 = vmul.f32 %v555, 0.03125
          %v557 = vlaneseq
          %v558 = vand.u32 %v557, 127
          %vm559 = vcmp.lt.s32.totalorder %v558, 32
          %v560 = vsub.f32 %v553, %v556
          %v561 = vsel %vm559, %v560, 0.0
          %v562 = vmul.f32 %v561, %v561
          %563 = vadd.xlane.f32.xlu0 %v562
          %v564 = vpop.xlane.xlu0 %563
          %v565 = vmul.f32 %v564, 0.03125
          %v566 = vadd.f32 %v565, 1e-05
          %v567 = vrsqrt.pop %v566
          %v568 = vmul.f32 %v567, %v566
          %v569 = vmul.f32 %v568, %v567
          %v570 = vmul.f32 0.5, %v569
          %v571 = vsub.f32 1.5, %v570
          %v572 = vmul.f32 %v567, %v571
          %vm573 = vweird.f32 %v566
          %vm574 = vweird.f32 %v567
          %vm575 = vmor %vm573, %vm574
          %v576 = vsel %vm575, %v567, %v572
          %v577 = vmul.f32 %v561, %v576
          %v578 = vld [vmem:[%s5] sm:$0x1]
          %v580 = vperm.slane %v578, 0
          %v582 = vmul.f32 %v577, %v580
          %v583 = vld [vmem:[%s6] sm:$0x1]
          %v585 = vperm.slane %v583, 0
          %v587 = vadd.f32 %v582, %v585
          %588 = vst [vmem:[%s366] sm:$0xff] %v587
        $region68: #{tpu_custom_call.1} parent=47 // pred_fallthru
          _
        %s589 = sand.u32 %s212, 1
        %s590 = scalar_lea.sflag [#allocation5], %s589
        %s591 = sand.u32 %s212, 1
        %s592 = smul.addr %s591, 8
        %s593 = scalar_lea.vmem [#allocation9], %s592
        // Predicated region
        $region69: #{tpu_custom_call.1} parent=47 // pred_check
          %p594 = pneg %p222
        $region70: #{tpu_custom_call.1} parent=47 // pred_check_branch
          %596 = sbr.rel (%p594) target = $region72
        $region71: #{tpu_custom_call.1} parent=47 // pred_region
          %598 = vsyncadd %s590, 0
          %s599 = smul.addr %s29, 8
          %s600 = scalar_lea.hbm %s7, %s599
          %s602 = sshll.u32 %s593, 4
          %s603 = int_to_ptr.vmem [resolvable:$true] %s602
          %s604 = sshll.u32 %s600, 4
          %s605 = int_to_ptr.hbm [resolvable:$true] %s604
          %607 = dma.vmem_to_hbm [thread:$0]  %s603, 128, %s605, %s590
        $region72: #{tpu_custom_call.1} parent=47 // pred_fallthru
          _
      $region48: #{tpu_custom_call.1} parent=5 // pred_fallthru
        _
      %p608 = scmp.le.s32.totalorder 2, %s20
      // Predicated region
      $region73: #{tpu_custom_call.1} parent=5 // pred_check
        %p609 = pneg %p608
      $region74: #{tpu_custom_call.1} parent=5 // pred_check_branch
        %611 = sbr.rel (%p609) target = $region76
      $region75: #{tpu_custom_call.1} parent=5 // pred_region
        %s612 = ssub.s32 %s20, 2
        // Predicated region
        $region77: #{tpu_custom_call.1} parent=75 // pred_check
          %p613 = pneg %p228
        $region78: #{tpu_custom_call.1} parent=75 // pred_check_branch
          %615 = sbr.rel (%p613) target = $region80
        $region79: #{tpu_custom_call.1} parent=75 // pred_region
          %s616 = sand.u32 %s213, 1
          %s617 = scalar_lea.sflag [#allocation5], %s616
          %s618 = sand.u32 %s213, 1
          %s619 = smul.addr %s618, 8
          %s620 = scalar_lea.vmem [#allocation9], %s619
          %622 = dma.done %s617, 128
        $region80: #{tpu_custom_call.1} parent=75 // pred_fallthru
          _
      $region76: #{tpu_custom_call.1} parent=5 // pred_fallthru
        _
    $region6: #{tpu_custom_call.1} parent=1 // loop_footer
      %s24 = sadd.s32 1, %s20
    $region7: #{tpu_custom_call.1} parent=1 // loop_footer_branch
      %19 = sbr.rel target = $region3
    $region8: #{tpu_custom_call.1} parent=1 // loop_exit
      _
    %623 = vsyncpa [#allocation4], 1
    %s624 = scalar_lea.sflag [#allocation4], 1
    %625 = vsyncpa %s624, 1
    %626 = vsyncpa [#allocation7], 1
    %627 = vsyncpa [#allocation5], 1
    %s628 = scalar_lea.sflag [#allocation5], 1
    %629 = vsyncpa %s628, 1

</llo_original>
